<compile_context>
chip_gen: v7x
topology: tpu7x:2x2x1
jax: 0.10.0
libtpu: 0.0.40
codegen_flags: <defaults>
</compile_context>

<pallas_src>
import functools
import math

import jax
import jax.numpy as jnp
from jax.experimental import pallas as pl
from jax.experimental.pallas import tpu as pltpu


# ----------------------------------------------------------------------------
# Pallas kernel: tiled GEMV  y[i] = sum_k x[i, k] * w[0, k]  + b
# ----------------------------------------------------------------------------
def dvn_kernel(x_ref, w_ref, b_ref, o_ref, *, n_in, tk, needs_k_mask):
    # x_ref: (tm, tk) VMEM     w_ref: (1, tk) VMEM     b_ref: (1,) SMEM
    # o_ref: (tm, 1) VMEM, revisited across the K grid axis (accumulator).
    k = pl.program_id(1)

    x = x_ref[...].astype(jnp.float32)
    w = w_ref[...].astype(jnp.float32)          # (1, tk) sublane-broadcast
    prod = x * w                                # (tm, tk)

    if needs_k_mask:
        # Last K tile sticks out past n_in: zero the invalid columns so that
        # whatever garbage the partial-block DMA left in VMEM cannot contribute.
        col = jax.lax.broadcasted_iota(jnp.int32, prod.shape, 1) + k * tk
        prod = jnp.where(col < n_in, prod, 0.0)

    partial = jnp.sum(prod, axis=-1, keepdims=True)   # (tm, 1) lane reduce (XLU)

    @pl.when(k == 0)
    def _init():
        o_ref[...] = jnp.full(o_ref.shape, b_ref[0], dtype=o_ref.dtype)

    o_ref[...] += partial


def irrep_dvn_forward(x, weight, bias, *, tm_max=256, tk_max=512):
    """IrrepDVN.forward:  y = x @ weight.T + bias.

    x: (batch, n_in) f32/bf16, weight: (1, n_in) f32/bf16, bias: (1,) f32
    returns: (batch, 1) f32
    """
    batch, n_in = x.shape
    assert weight.shape == (1, n_in), weight.shape
    assert tm_max % 8 == 0 and tk_max % 128 == 0

    # Batch tile: whole batch if it fits one tile, else a multiple-of-8 tile.
    tm = batch if batch <= tm_max else tm_max
    # Reduction tile: whole feature dim if small, else a multiple-of-128 tile.
    if n_in <= tk_max:
        tk, needs_k_mask = n_in, False
    else:
        tk, needs_k_mask = tk_max, (n_in % tk_max) != 0

    num_i = pl.cdiv(batch, tm)
    num_k = pl.cdiv(n_in, tk)

    bias = jnp.asarray(bias, jnp.float32).reshape(1)

    kernel = functools.partial(
        dvn_kernel, n_in=n_in, tk=tk, needs_k_mask=needs_k_mask)

    return pl.pallas_call(
        kernel,
        out_shape=jax.ShapeDtypeStruct((batch, 1), jnp.float32),
        grid=(num_i, num_k),
        in_specs=[
            pl.BlockSpec((tm, tk), lambda i, k: (i, k)),        # x tile
            pl.BlockSpec((1, tk), lambda i, k: (0, k)),         # weight row tile
            pl.BlockSpec(memory_space=pltpu.MemorySpace.SMEM),  # bias scalar
        ],
        out_specs=pl.BlockSpec((tm, 1), lambda i, k: (i, 0)),
        compiler_params=pltpu.CompilerParams(
            dimension_semantics=("parallel", "arbitrary")),
    )(x, weight, bias)


# ----------------------------------------------------------------------------
# FerrersDiagram stand-ins (constructor-time Python, not part of the kernel):
# partition enumeration + number of standard Young tableaux via hook lengths.
# ----------------------------------------------------------------------------
def _gen_partitions(n, max_part=None):
    if max_part is None:
        max_part = n
    if n == 0:
        yield ()
        return
    for first in range(min(n, max_part), 0, -1):
        for rest in _gen_partitions(n - first, first):
            yield (first,) + rest


def _num_standard_tableaux(partition):
    rows = list(partition)
    n = sum(rows)
    hook_prod = 1
    for i, r in enumerate(rows):
        for j in range(r):
            arm = r - j - 1
            leg = sum(1 for k in range(i + 1, len(rows)) if rows[k] > j)
            hook_prod *= arm + leg + 1
    return math.factorial(n) // hook_prod


if __name__ == "__main__":
    key = jax.random.PRNGKey(0)

    # (tile_size, batch, tiling overrides).  The second config forces a
    # (3, 6) grid with partial tiles on BOTH axes (300 % 128 != 0,
    # 720 % 128 != 0) to exercise the masked-reduction and partial-output
    # paths with small shapes.
    configs = [
        (3, 8, dict()),                          # module's tiny shipped shape
        (6, 300, dict(tm_max=128, tk_max=128)),  # n_in = 6! = 720
    ]

    for tile_size, batch, tile_kw in configs:
        partitions = list(_gen_partitions(tile_size))
        n_in = sum(_num_standard_tableaux(p) ** 2 for p in partitions)
        n_out = 1

        key, k_w, k_b, k_x = jax.random.split(key, 4)
        # IrrepDVN.init_weights(): N(0, 1/sqrt(n_in + n_out)) weights ...
        weight = (jax.random.normal(k_w, (1, n_in), jnp.float32)
                  / math.sqrt(n_in + n_out))
        # ... bias fixed for tile_size 2 / 3, otherwise nn.Linear's default init.
        if tile_size == 2:
            bias_val = -3.0
        elif tile_size == 3:
            bias_val = -21.97
        else:
            bound = 1.0 / math.sqrt(n_in)
            bias_val = float(jax.random.uniform(k_b, (), minval=-bound, maxval=bound))
        bias = jnp.array([bias_val], jnp.float32)

        x = jax.random.normal(k_x, (batch, n_in), jnp.float32)

        out = irrep_dvn_forward(x, weight, bias, **tile_kw)
        out = jax.block_until_ready(out)

        ref = x @ weight.T + bias
        assert out.shape == (batch, 1), out.shape
        assert jnp.allclose(out, ref, atol=1e-4, rtol=1e-4), (
            tile_size, float(jnp.max(jnp.abs(out - ref))))

    print("KERNEL_OK")
</pallas_src>

<mosaic_0001>
module attributes {stable_mosaic.version = 11 : i64} {
  func.func @dvn_kernel(%arg0: i32, %arg1: i32, %arg2: memref<8x6xf32, #tpu.memory_space<vmem>>, %arg3: memref<1x6xf32, #tpu.memory_space<vmem>>, %arg4: memref<1xf32, #tpu.memory_space<smem>>, %arg5: memref<8x1xf32, #tpu.memory_space<vmem>>) attributes {dimension_semantics = [#tpu.dimension_semantics<parallel>, #tpu.dimension_semantics<arbitrary>], iteration_bounds = array<i64: 1, 1>, scalar_prefetch = 0 : i64, scratch_operands = 0 : i64, tpu.core_type = #tpu.core_type<tc>, window_params = [{transform_indices = @transform_0, window_bounds = array<i64: 8, 6>}, {transform_indices = @transform_1, window_bounds = array<i64: 1, 6>}, {transform_indices = @transform_2, window_bounds = array<i64: 1>}, {transform_indices = @transform_3, window_bounds = array<i64: 8, 1>}]} {
    %c0 = arith.constant 0 : index
    %c0_0 = arith.constant 0 : index
    %0 = vector.load %arg2[%c0, %c0_0] : memref<8x6xf32, #tpu.memory_space<vmem>>, vector<8x6xf32>
    %c0_1 = arith.constant 0 : index
    %c0_2 = arith.constant 0 : index
    %1 = vector.load %arg3[%c0_1, %c0_2] : memref<1x6xf32, #tpu.memory_space<vmem>>, vector<1x6xf32>
    %2 = vector.broadcast %1 : vector<1x6xf32> to vector<8x6xf32>
    %3 = arith.mulf %0, %2 : vector<8x6xf32>
    %cst = arith.constant dense<0.000000e+00> : vector<8xf32>
    %4 = vector.multi_reduction <add>, %3, %cst [1] : vector<8x6xf32> to vector<8xf32>
    %5 = vector.shape_cast %4 : vector<8xf32> to vector<8x1xf32>
    %c0_i32 = arith.constant 0 : i32
    %6 = arith.cmpi eq, %arg1, %c0_i32 : i32
    %7 = arith.extui %6 : i1 to i32
    %c0_i32_3 = arith.constant 0 : i32
    %8 = arith.cmpi ne, %7, %c0_i32_3 : i32
    scf.if %8 {
      %c0_8 = arith.constant 0 : index
      %12 = memref.load %arg4[%c0_8] : memref<1xf32, #tpu.memory_space<smem>>
      %13 = vector.broadcast %12 : f32 to vector<8x1xf32>
      %c0_9 = arith.constant 0 : index
      %c0_10 = arith.constant 0 : index
      %14 = vector.load %arg5[%c0_9, %c0_10] : memref<8x1xf32, #tpu.memory_space<vmem>>, vector<8x1xf32>
      tpu.vector_store %arg5[%c0_9, %c0_10], %13 {strides = array<i32>} : memref<8x1xf32, #tpu.memory_space<vmem>>, vector<8x1xf32>,
    } else {
    }
    %c0_4 = arith.constant 0 : index
    %c0_5 = arith.constant 0 : index
    %9 = vector.load %arg5[%c0_4, %c0_5] : memref<8x1xf32, #tpu.memory_space<vmem>>, vector<8x1xf32>
    %10 = arith.addf %9, %5 : vector<8x1xf32>
    %c0_6 = arith.constant 0 : index
    %c0_7 = arith.constant 0 : index
    %11 = vector.load %arg5[%c0_6, %c0_7] : memref<8x1xf32, #tpu.memory_space<vmem>>, vector<8x1xf32>
    tpu.vector_store %arg5[%c0_6, %c0_7], %10 {strides = array<i32>} : memref<8x1xf32, #tpu.memory_space<vmem>>, vector<8x1xf32>,
    return
  }
  func.func @transform_0(%arg0: i32, %arg1: i32) -> (i32, i32) {
    %c0_i32 = arith.constant 0 : i32
    return %arg0, %arg1 : i32, i32
  }
  func.func @transform_1(%arg0: i32, %arg1: i32) -> (i32, i32) {
    %c0_i32 = arith.constant 0 : i32
    %c0_i32_0 = arith.constant 0 : i32
    return %c0_i32, %arg1 : i32, i32
  }
  func.func @transform_2(%arg0: i32, %arg1: i32) -> i32 {
    %c0_i32 = arith.constant 0 : i32
    %c0_i32_0 = arith.constant 0 : i32
    return %c0_i32 : i32
  }
  func.func @transform_3(%arg0: i32, %arg1: i32) -> (i32, i32) {
    %c0_i32 = arith.constant 0 : i32
    %c0_i32_0 = arith.constant 0 : i32
    return %arg0, %c0_i32 : i32, i32
  }
}

</mosaic_0001>

<llo_original>
// kernel: tpu_custom_call.1
$region0: #{tpu_custom_call.1}
  #allocation0 [shape = 'u32[]', space=smem, size = 0x4, offset = 0x4, fixed_abs, tag = 'smem constant byte address 0x4 - core index']
  #allocation1 [shape = 'u32[144,128]{1,0:T(1,128)}', space=vmem, size = 0x12000, scoped, tag = 'internal scratch']
  #allocation2 [shape = 'f32[1]{0:T(128)S(6)}', space=smem, size = 0x200, scoped, tag = 'scoped memory for tpu_custom_call.1']
  %s0 = inlined_call_operand.hbm [shape: f32[8,6], index: 0, kind: input, shape index: {}]
  %s1 = inlined_call_operand.vmem [shape: f32[1,6], index: 1, kind: input, shape index: {}]
  %s2 = inlined_call_operand.<no memory space> [shape: f32[1], index: 2, kind: input, shape index: {}]
  %s3 = inlined_call_operand.vmem [shape: f32[8,1], index: 3, kind: output, shape index: {}]
  %s4 = sld [smem:[#allocation0]]
  $region30: #{tpu_custom_call.1} parent=0
    _
  %s6 = ssub.s32 1, %s4
  %s7 = scalar_select 0, %s6, %s4
  %8 = sst [smem:[#allocation2]] %s2
  $region1: #{tpu_custom_call.1} parent=0
    #allocation3 [shape = 'u8[4096]{0}', space=vmem, size = 0x1000, scoped, tag = 'input window, operand 0, single buffered']
    #allocation4 [shape = 's32[1]{0}', space=sflag, size = 0x4, scoped, tag = 'scoped memory for tpu_custom_call.1']
    %9 = vsyncpa [#allocation4], 0
    // Predicated region
    $region2: #{tpu_custom_call.1} parent=1 // pred_check
      _
    $region3: #{tpu_custom_call.1} parent=1 // pred_check_branch
      %11 = sbr.rel (0) target = $region5
    $region4: #{tpu_custom_call.1} parent=1 // pred_region
      %s13 = ssub.s32 128, 128
      %14 = vsyncadd [#allocation4], %s13
      %s16 = sshll.u32 [#allocation3], 4
      %s17 = int_to_ptr.vmem [resolvable:$true] %s16
      %19 = dma.hbm_to_vmem [thread:$0]  %s0, 128, %s17, [#allocation4]
    $region5: #{tpu_custom_call.1} parent=1 // pred_fallthru
      _
    // Predicated region
    $region6: #{tpu_custom_call.1} parent=1 // pred_check
      _
    $region7: #{tpu_custom_call.1} parent=1 // pred_check_branch
      %21 = sbr.rel (0) target = $region9
    $region8: #{tpu_custom_call.1} parent=1 // pred_region
      _
    $region9: #{tpu_custom_call.1} parent=1 // pred_fallthru
      _
    // Predicated region
    $region10: #{tpu_custom_call.1} parent=1 // pred_check
      _
    $region11: #{tpu_custom_call.1} parent=1 // pred_check_branch
      %23 = sbr.rel (0) target = $region13
    $region12: #{tpu_custom_call.1} parent=1 // pred_region
      _
    $region13: #{tpu_custom_call.1} parent=1 // pred_fallthru
      _
    // Predicated region
    $region14: #{tpu_custom_call.1} parent=1 // pred_check
      _
    $region15: #{tpu_custom_call.1} parent=1 // pred_check_branch
      %25 = sbr.rel (0) target = $region17
    $region16: #{tpu_custom_call.1} parent=1 // pred_region
      %26 = dma.done [#allocation4], 128
    $region17: #{tpu_custom_call.1} parent=1 // pred_fallthru
      _
    %v27 = vld [vmem:[#allocation3] sm:$0xff]
    %v28 = vld [vmem:[%s1] sm:$0x1]
    %v30 = vlaneseq
    %v31 = vshrl.u32 %v30, 7
    %v32 = vsub.s32 0, %v31
    %v33 = vrot.slane %v28, %v32
    %v35 = vmul.f32 %v27, %v33
    %vm36 = vcmask 48128
    %v37 = vsel %vm36, %v35, 0.0
    %38 = vadd.xlane.f32.xlu0 %v37
    %v39 = vpop.xlane.xlu0 %38
    %p40 = scmp.eq.s32.totalorder 0, 0
    // Predicated region
    $region18: #{tpu_custom_call.1} parent=1 // pred_check
      %p41 = pneg %p40
    $region19: #{tpu_custom_call.1} parent=1 // pred_check_branch
      %43 = sbr.rel (%p41) target = $region21
    $region20: #{tpu_custom_call.1} parent=1 // pred_region
      %s44 = sld [smem:[#allocation2]]
      %v45 = vstv %s44
      %vm46 = vcmask 7168
      %47 = vst.msk [vmem:[%s3] sm:$0xff] %vm46, %v45
    $region21: #{tpu_custom_call.1} parent=1 // pred_fallthru
      _
    %v48 = vld [vmem:[%s3] sm:$0xff]
    %v49 = vadd.f32 %v48, %v39
    %vm50 = vcmask 7168
    %51 = vst.msk [vmem:[%s3] sm:$0xff] %vm50, %v49
    // Predicated region
    $region22: #{tpu_custom_call.1} parent=1 // pred_check
      _
    $region23: #{tpu_custom_call.1} parent=1 // pred_check_branch
      %53 = sbr.rel (0) target = $region25
    $region24: #{tpu_custom_call.1} parent=1 // pred_region
      _
    $region25: #{tpu_custom_call.1} parent=1 // pred_fallthru
      _
    // Predicated region
    $region26: #{tpu_custom_call.1} parent=1 // pred_check
      _
    $region27: #{tpu_custom_call.1} parent=1 // pred_check_branch
      %55 = sbr.rel (0) target = $region29
    $region28: #{tpu_custom_call.1} parent=1 // pred_region
      _
    $region29: #{tpu_custom_call.1} parent=1 // pred_fallthru
      _
    %56 = vsyncpa [#allocation4], 1

</llo_original>
